<compile_context>
chip_gen: v7x
topology: tpu7x:2x2x1
jax: 0.10.0
libtpu: 0.0.40
codegen_flags: <defaults>
</compile_context>

<pallas_src>
import functools
from typing import NamedTuple

import jax
import jax.numpy as jnp
from jax.experimental import pallas as pl
from jax.experimental.pallas import tpu as pltpu


def _round_up(x, m):
    return ((x + m - 1) // m) * m


class GRUConfig(NamedTuple):
    num_layers: int
    H: int         # true hidden size
    HW: int        # padded working width of the hidden state
    Wg: int        # gate-block width (columns of w_ih / w_hh)
    Dp: int        # padded input-feature dim (layer 0)
    Cp: int        # padded num_classes (lane-dense output store)
    C: int         # true num_classes
    packed: bool   # r|z|n packed into a single 128-lane block
    roll_np: bool  # pltpu.roll follows the np.roll sign convention


@functools.lru_cache(maxsize=None)
def _roll_is_np_convention():
    """One-time probe of pltpu.roll's lane-rotation sign (defensive: the kernel
    adjusts its static shifts so it is correct under either convention)."""
    x = jnp.tile(jnp.arange(128, dtype=jnp.float32), (8, 1))

    def probe(x_ref, o_ref):
        o_ref[...] = pltpu.roll(x_ref[...], shift=1, axis=1)

    y = pl.pallas_call(
        probe,
        out_shape=jax.ShapeDtypeStruct((8, 128), jnp.float32),
        in_specs=[pl.BlockSpec(memory_space=pltpu.MemorySpace.VMEM)],
        out_specs=pl.BlockSpec(memory_space=pltpu.MemorySpace.VMEM),
    )(x)
    return bool(y[0, 1] == 0.0)  # np.roll convention: element 0 lands at index 1


def make_gru_kernel(T, Bp, cfg):
    num_layers, H, HW, Wg, packed = cfg.num_layers, cfg.H, cfg.HW, cfg.Wg, cfg.packed
    bhn_w = Wg if packed else HW

    def lane_roll(x, shift):
        s = shift % Wg
        if s == 0:
            return x
        if not cfg.roll_np:
            s = (Wg - s) % Wg
        return pltpu.roll(x, shift=s, axis=1)

    def gru_step(gi_t, h, w_hh_bf, b_hn_b):
        """One GRU cell step.  gi_t: (Bp, Wg) f32 input projection with b_ih
        (and the r/z hidden biases) pre-folded.  h: (Bp, HW) f32 hidden state,
        or None for the all-zero initial state (skips the gh matmul)."""
        if h is None:
            gh = None
            g = gi_t
        else:
            gh = jnp.dot(h.astype(jnp.bfloat16), w_hh_bf,
                         preferred_element_type=jnp.float32)
            g = gi_t + gh
        if packed:
            sig = jax.nn.sigmoid(g)                      # r at [0,H), z at [H,2H)
            r_n = lane_roll(sig, 2 * H)                  # r moved onto the n lanes
            ghn = b_hn_b if gh is None else gh + b_hn_b
            n_act = jnp.tanh(gi_t + r_n * ghn)           # n valid at [2H,3H)
            z0 = lane_roll(sig, Wg - H)                  # z moved onto [0,H)
            n0 = lane_roll(n_act, Wg - 2 * H)            # n moved onto [0,H)
            if h is None:
                return n0 - z0 * n0                      # (1-z)*n   (h == 0)
            return n0 + z0 * (h - n0)                    # (1-z)*n + z*h
        else:
            # Gates at 128-lane-aligned offsets 0, HW, 2*HW (free slices).
            r = jax.nn.sigmoid(g[:, 0:HW])
            z = jax.nn.sigmoid(g[:, HW:2 * HW])
            ghn = b_hn_b if gh is None else gh[:, 2 * HW:3 * HW] + b_hn_b
            n = jnp.tanh(gi_t[:, 2 * HW:3 * HW] + r * ghn)
            if h is None:
                return n - z * n
            return n + z * (h - n)

    def kernel(*refs):
        x_ref = refs[0]
        layers = [refs[1 + 4 * l: 1 + 4 * l + 4] for l in range(num_layers)]
        base = 1 + 4 * num_layers
        fc_w_ref, fc_b_ref, out_ref = refs[base], refs[base + 1], refs[base + 2]

        # Hoist all weight loads and the b_hn broadcast out of the unrolled loops.
        w_ih = [lr[0][...] for lr in layers]
        w_hh = [lr[1][...] for lr in layers]
        b_gi = [lr[2][...] for lr in layers]
        b_hn = [jnp.broadcast_to(lr[3][...], (Bp, bhn_w)) for lr in layers]

        # Layer 0: single hoisted whole-sequence input projection (one MXU call),
        # with b_ih (+ r/z hidden biases) pre-folded.
        gi0 = jnp.dot(x_ref[...], w_ih[0],
                      preferred_element_type=jnp.float32) + b_gi[0]

        h = [None] * num_layers          # per-layer hidden state (None == zeros)
        prev_out = [None] * num_layers   # layer l's h at its latest finished timestep

        # Wavefront over layers: global step s runs layer l at timestep t = s - l.
        # Work of different layers within a step is independent -> overlappable.
        for s in range(T + num_layers - 1):
            produced = {}
            for l in range(num_layers):
                t = s - l
                if t < 0 or t >= T:
                    continue
                if l == 0:
                    gi_t = gi0[t * Bp:(t + 1) * Bp, :]
                else:
                    gi_t = jnp.dot(prev_out[l - 1].astype(jnp.bfloat16), w_ih[l],
                                   preferred_element_type=jnp.float32) + b_gi[l]
                h[l] = gru_step(gi_t, h[l], w_hh[l], b_hn[l])
                produced[l] = h[l]
            for l, v in produced.items():  # commit after the step: layer l reads the
                prev_out[l] = v            # value layer l-1 produced one step earlier

        # Classifier head on the last layer's final hidden state (== h_n[-1]).
        logits = jnp.dot(h[num_layers - 1].astype(jnp.bfloat16), fc_w_ref[...],
                         preferred_element_type=jnp.float32) + fc_b_ref[...]
        out_ref[...] = logits.astype(out_ref.dtype)

    return kernel


def _prepare_layer(w_ih, w_hh, b_ih, b_hh, in_dim, in_pad, H, HW, Wg, stride, packed):
    w_ih = jnp.asarray(w_ih, jnp.float32)   # (3H, in_dim)  PyTorch layout
    w_hh = jnp.asarray(w_hh, jnp.float32)   # (3H, H)
    b_ih = jnp.asarray(b_ih, jnp.float32)   # (3H,)
    b_hh = jnp.asarray(b_hh, jnp.float32)   # (3H,)
    w_ih_p = jnp.zeros((in_pad, Wg), jnp.float32)
    w_hh_p = jnp.zeros((HW, Wg), jnp.float32)
    for g in range(3):                       # gate order: r, z, n
        c0 = g * stride
        w_ih_p = w_ih_p.at[:in_dim, c0:c0 + H].set(w_ih[g * H:(g + 1) * H, :].T)
        w_hh_p = w_hh_p.at[:H, c0:c0 + H].set(w_hh[g * H:(g + 1) * H, :].T)
    # Fold input biases (and the r/z hidden biases) into one gi bias vector.
    b_gi = jnp.zeros((1, Wg), jnp.float32)
    b_gi = b_gi.at[0, 0 * stride:0 * stride + H].set(b_ih[0:H] + b_hh[0:H])          # r
    b_gi = b_gi.at[0, 1 * stride:1 * stride + H].set(b_ih[H:2 * H] + b_hh[H:2 * H])  # z
    b_gi = b_gi.at[0, 2 * stride:2 * stride + H].set(b_ih[2 * H:3 * H])              # n (input only)
    # The n-gate hidden bias must stay inside r*(gh_n + b_hn); place it on the n lanes.
    if packed:
        b_hn = jnp.zeros((1, Wg), jnp.float32).at[0, 2 * stride:2 * stride + H].set(b_hh[2 * H:3 * H])
    else:
        b_hn = jnp.zeros((1, HW), jnp.float32).at[0, :H].set(b_hh[2 * H:3 * H])
    return (w_ih_p.astype(jnp.bfloat16), w_hh_p.astype(jnp.bfloat16), b_gi, b_hn)


def prepare_gru_classifier(gru_params, fc_w, fc_b, input_size, hidden_size, num_classes):
    """One-time weight prep (padding, transposition, bias folding, bf16 cast)."""
    H, C = hidden_size, num_classes
    num_layers = len(gru_params)
    packed = (3 * H) <= 128
    if packed:
        HW = Wg = 128          # h and all three gates live in one 128-lane block
        stride = H
    else:
        HW = _round_up(H, 128)
        Wg = 3 * HW            # gate blocks at 128-lane-aligned offsets
        stride = HW
    Dp = _round_up(input_size, 128)
    Cp = _round_up(C, 128)

    params = []
    for l, (w_ih, w_hh, b_ih, b_hh) in enumerate(gru_params):
        in_dim = input_size if l == 0 else H
        in_pad = Dp if l == 0 else HW
        params += list(_prepare_layer(w_ih, w_hh, b_ih, b_hh,
                                      in_dim, in_pad, H, HW, Wg, stride, packed))

    fc_w_p = (jnp.zeros((HW, Cp), jnp.float32)
              .at[:H, :C].set(jnp.asarray(fc_w, jnp.float32).T)
              .astype(jnp.bfloat16))
    fc_b_p = jnp.zeros((1, Cp), jnp.float32).at[0, :C].set(jnp.asarray(fc_b, jnp.float32))
    params += [fc_w_p, fc_b_p]

    roll_np = _roll_is_np_convention() if packed else True
    cfg = GRUConfig(num_layers=num_layers, H=H, HW=HW, Wg=Wg, Dp=Dp, Cp=Cp, C=C,
                    packed=packed, roll_np=roll_np)
    return tuple(params), cfg


@functools.partial(jax.jit, static_argnames=("cfg",))
def gru_classifier_forward(x, params, cfg):
    """x: (B, T, D) float; params/cfg from prepare_gru_classifier."""
    B, T, D = x.shape
    Bp = _round_up(B, 8)    # full sublane group -> unmasked per-step vector ops
    # Time-major, batch/feature zero-padded, flattened, bf16 for the MXU.
    x_tm = jnp.transpose(x.astype(jnp.float32), (1, 0, 2))            # (T, B, D)
    x_pad = jnp.zeros((T, Bp, cfg.Dp), jnp.float32).at[:, :B, :D].set(x_tm)
    x_flat = x_pad.reshape(T * Bp, cfg.Dp).astype(jnp.bfloat16)

    kernel = make_gru_kernel(T, Bp, cfg)
    flat_args = (x_flat,) + tuple(params)
    out_padded = pl.pallas_call(
        kernel,
        out_shape=jax.ShapeDtypeStruct((Bp, cfg.Cp), jnp.float32),
        in_specs=[pl.BlockSpec(memory_space=pltpu.MemorySpace.VMEM)] * len(flat_args),
        out_specs=pl.BlockSpec(memory_space=pltpu.MemorySpace.VMEM),
    )(*flat_args)
    return out_padded[:B, :cfg.C]


def gru_classifier_ref(x, gru_params, fc_w, fc_b, hidden_size):
    """Pure-JAX f32 reference (mirrors torch.nn.GRU eval-mode forward)."""
    B, T, _ = x.shape
    H = hidden_size
    inp = x.astype(jnp.float32)
    h = None
    for (w_ih, w_hh, b_ih, b_hh) in gru_params:
        h = jnp.zeros((B, H), jnp.float32)
        outs = []
        for t in range(T):
            x_t = inp[:, t, :]
            gi = x_t @ w_ih.T + b_ih
            gh = h @ w_hh.T + b_hh
            r = jax.nn.sigmoid(gi[:, :H] + gh[:, :H])
            z = jax.nn.sigmoid(gi[:, H:2 * H] + gh[:, H:2 * H])
            n = jnp.tanh(gi[:, 2 * H:] + r * gh[:, 2 * H:])
            h = (1.0 - z) * n + z * h
            outs.append(h)
        inp = jnp.stack(outs, axis=1)
    return h @ fc_w.T + fc_b


if __name__ == "__main__":
    # Model config (mirrors GRUClassifier.__init__); dropout is eval-time identity.
    input_size = 16
    hidden_size = 32
    num_layers = 2
    num_classes = 5
    B, T = 2, 8

    key = jax.random.PRNGKey(0)
    key, kx = jax.random.split(key)
    x = jax.random.normal(kx, (B, T, input_size), dtype=jnp.float32)

    # Deterministic params (uniform in [-1/sqrt(H), 1/sqrt(H)], like PyTorch).
    bound = 1.0 / (hidden_size ** 0.5)
    gru_params = []
    for l in range(num_layers):
        in_l = input_size if l == 0 else hidden_size
        key, k1, k2, k3, k4 = jax.random.split(key, 5)
        w_ih = jax.random.uniform(k1, (3 * hidden_size, in_l), jnp.float32, -bound, bound)
        w_hh = jax.random.uniform(k2, (3 * hidden_size, hidden_size), jnp.float32, -bound, bound)
        b_ih = jax.random.uniform(k3, (3 * hidden_size,), jnp.float32, -bound, bound)
        b_hh = jax.random.uniform(k4, (3 * hidden_size,), jnp.float32, -bound, bound)
        gru_params.append((w_ih, w_hh, b_ih, b_hh))

    key, k5, k6 = jax.random.split(key, 3)
    fc_w = jax.random.uniform(k5, (num_classes, hidden_size), jnp.float32, -bound, bound)
    fc_b = jax.random.uniform(k6, (num_classes,), jnp.float32, -bound, bound)

    # Weight prep hoisted out of the per-call path; the forward itself is jitted.
    params, cfg = prepare_gru_classifier(gru_params, fc_w, fc_b,
                                         input_size, hidden_size, num_classes)

    out = gru_classifier_forward(x, params, cfg)
    out = jax.block_until_ready(out)

    ref = jax.block_until_ready(gru_classifier_ref(x, gru_params, fc_w, fc_b, hidden_size))

    assert out.shape == (B, num_classes)
    # bf16 MXU operands (f32 accumulation) -> tolerance loosened vs. a pure-f32 run.
    assert jnp.allclose(out, ref, rtol=3e-2, atol=3e-2), (out, ref)

    print("KERNEL_OK")
</pallas_src>

<mosaic_0001>
module attributes {stable_mosaic.version = 11 : i64} {
  func.func @probe(%arg0: memref<8x128xf32, #tpu.memory_space<vmem>>, %arg1: memref<8x128xf32, #tpu.memory_space<vmem>>) attributes {dimension_semantics = [], scalar_prefetch = 0 : i64, scratch_operands = 0 : i64, tpu.core_type = #tpu.core_type<tc>} {
    %c0 = arith.constant 0 : index
    %c0_0 = arith.constant 0 : index
    %0 = vector.load %arg0[%c0, %c0_0] : memref<8x128xf32, #tpu.memory_space<vmem>>, vector<8x128xf32>
    %c1_i32 = arith.constant 1 : i32
    %1 = tpu.dynamic_rotate %0 by %c1_i32 dim 1 : vector<8x128xf32>, i32 -> vector<8x128xf32>
    %c0_1 = arith.constant 0 : index
    %c0_2 = arith.constant 0 : index
    %2 = vector.load %arg1[%c0_1, %c0_2] : memref<8x128xf32, #tpu.memory_space<vmem>>, vector<8x128xf32>
    tpu.vector_store %arg1[%c0_1, %c0_2], %1 {strides = array<i32>} : memref<8x128xf32, #tpu.memory_space<vmem>>, vector<8x128xf32>,
    return
  }
}

</mosaic_0001>

<llo_original>
// kernel: tpu_custom_call.1
$region0: #{tpu_custom_call.1}
  #allocation0 [shape = 'u32[]', space=smem, size = 0x4, offset = 0x4, fixed_abs, tag = 'smem constant byte address 0x4 - core index']
  #allocation1 [shape = 'u32[144,128]{1,0:T(1,128)}', space=vmem, size = 0x12000, scoped, tag = 'internal scratch']
  %s0 = inlined_call_operand.hbm [shape: f32[8,128], index: 0, kind: input, shape index: {}]
  %s1 = inlined_call_operand.hbm [shape: f32[8,128], index: 1, kind: output, shape index: {}]
  %s2 = sld [smem:[#allocation0]]
  $region18: #{tpu_custom_call.1} parent=0
    _
  %s4 = ssub.s32 1, %s2
  %s5 = scalar_select 0, %s4, %s2
  $region1: #{tpu_custom_call.1} parent=0
    #allocation2 [shape = 'u8[4096]{0}', space=vmem, size = 0x1000, scoped, tag = 'input window, operand 0, single buffered']
    #allocation3 [shape = 's32[1]{0}', space=sflag, size = 0x4, scoped, tag = 'scoped memory for tpu_custom_call.1']
    #allocation4 [shape = 's32[1]{0}', space=sflag, size = 0x4, scoped, tag = 'scoped memory for tpu_custom_call.1']
    #allocation5 [shape = 'u8[4096]{0}', space=vmem, size = 0x1000, scoped, tag = 'output window, operand 0, single buffered']
    %6 = vsyncpa [#allocation3], 0
    %7 = vsyncpa [#allocation4], 0
    // Predicated region
    $region2: #{tpu_custom_call.1} parent=1 // pred_check
      _
    $region3: #{tpu_custom_call.1} parent=1 // pred_check_branch
      %9 = sbr.rel (0) target = $region5
    $region4: #{tpu_custom_call.1} parent=1 // pred_region
      %s11 = ssub.s32 128, 128
      %12 = vsyncadd [#allocation3], %s11
      %s14 = sshll.u32 [#allocation2], 4
      %s15 = int_to_ptr.vmem [resolvable:$true] %s14
      %17 = dma.hbm_to_vmem [thread:$0]  %s0, 128, %s15, [#allocation3]
    $region5: #{tpu_custom_call.1} parent=1 // pred_fallthru
      _
    // Predicated region
    $region6: #{tpu_custom_call.1} parent=1 // pred_check
      _
    $region7: #{tpu_custom_call.1} parent=1 // pred_check_branch
      %19 = sbr.rel (0) target = $region9
    $region8: #{tpu_custom_call.1} parent=1 // pred_region
      %20 = dma.done [#allocation3], 128
    $region9: #{tpu_custom_call.1} parent=1 // pred_fallthru
      _
    %v21 = vld [vmem:[#allocation2] sm:$0xff]
    %22 = vrot.lane.b32.xlu0 %v21, 1
    %v23 = vpop.permute.xlu0 %22
    %24 = vst [vmem:[#allocation5] sm:$0xff] %v23
    // Predicated region
    $region10: #{tpu_custom_call.1} parent=1 // pred_check
      _
    $region11: #{tpu_custom_call.1} parent=1 // pred_check_branch
      %26 = sbr.rel (0) target = $region13
    $region12: #{tpu_custom_call.1} parent=1 // pred_region
      %s28 = ssub.s32 128, 128
      %29 = vsyncadd [#allocation4], %s28
      %s31 = sshll.u32 [#allocation5], 4
      %s32 = int_to_ptr.vmem [resolvable:$true] %s31
      %34 = dma.vmem_to_hbm [thread:$0]  %s32, 128, %s1, [#allocation4]
    $region13: #{tpu_custom_call.1} parent=1 // pred_fallthru
      _
    // Predicated region
    $region14: #{tpu_custom_call.1} parent=1 // pred_check
      _
    $region15: #{tpu_custom_call.1} parent=1 // pred_check_branch
      %36 = sbr.rel (0) target = $region17
    $region16: #{tpu_custom_call.1} parent=1 // pred_region
      %37 = dma.done [#allocation4], 128
    $region17: #{tpu_custom_call.1} parent=1 // pred_fallthru
      _
    %38 = vsyncpa [#allocation3], 1
    %39 = vsyncpa [#allocation4], 1

</llo_original>
